<compile_context>
chip_gen: v5e
topology: v5e:2x2
jax: 0.10.0
libtpu: 0.0.40
codegen_flags: <defaults>
</compile_context>

<pallas_src>
import functools

import jax
import jax.numpy as jnp
from jax.experimental import pallas as pl
from jax.experimental.pallas import tpu as pltpu


# --------------------------------------------------------------------------
# Fused Pallas kernel: F (mapping) || (F·G) (generator) -> E (encoder) -> loss
# --------------------------------------------------------------------------

def _fused_autoencoder_loss_kernel(
    z_ref, wf_ref, bf_ref, wfg_ref, bfg_ref, we_ref, be_ref, sw_ref, sh_ref,
    o_ref, *, b_real, w,
):
    b_pad = z_ref.shape[0]
    lat = bf_ref.shape[1]
    img = bfg_ref.shape[1]          # C * H * W, kept flat / lane-dense

    z = z_ref[...]                                              # bf16

    # ---- F and (F->G collapsed) generator: two INDEPENDENT bf16 matmuls off z
    # (W_FG = W_F @ W_G with alpha folded in), f32 accumulation on the MXU.
    f_x = (jnp.dot(z, wf_ref[...], preferred_element_type=jnp.float32)
           + bf_ref[...])                                       # (B_pad, lat) f32
    g_z = (jnp.dot(z, wfg_ref[...], preferred_element_type=jnp.float32)
           + bfg_ref[...])                                      # (B_pad, img) f32

    # ---- E: encoder.  Only the matmul operand is cast to bf16; g_z stays f32
    # for the TV math below.
    e_z = (jnp.dot(g_z.astype(jnp.bfloat16), we_ref[...],
                   preferred_element_type=jnp.float32)
           + be_ref[...])                                       # (B_pad, lat) f32

    # ---- batch row mask, (B_pad, 1) only: padded sublane rows carry
    # bias-driven garbage and must never reach a reduction.
    row_ok = jax.lax.broadcasted_iota(jnp.int32, (b_pad, 1), 0) < b_real

    # ---- MSE(F_x, E_z): per-row partial (the module's injected loss_fn = MSE).
    d = f_x - e_z
    mse_row = jnp.sum(d * d, axis=-1, keepdims=True) * (1.0 / lat)

    # ---- total_variation(G_z) on the flat lane-dense layout.
    # pltpu.roll follows jnp.roll semantics (shift toward higher indices), so a
    # shift of img-1 == -1 puts element j+1 at lane j (width neighbour) and a
    # shift of img-w == -W puts element j+W at lane j (height neighbour).  The
    # wrap-around lanes are zeroed by the precomputed sw / sh scale vectors,
    # which also carry the 1/(C*H*(W-1)) and 1/(C*(H-1)*W) denominators.
    g_next_w = pltpu.roll(g_z, img - 1, 1)
    g_next_h = pltpu.roll(g_z, img - w, 1)
    tv_elem = (jnp.abs(g_z - g_next_w) * sw_ref[...]
               + jnp.abs(g_z - g_next_h) * sh_ref[...])
    tv_row = jnp.sum(tv_elem, axis=-1, keepdims=True)

    # ---- single masked final reduction; 1/B applied once to the scalar.
    total = jnp.sum(jnp.where(row_ok, mse_row + tv_row, 0.0))
    o_ref[0] = total * (1.0 / b_real)


# --------------------------------------------------------------------------
# Host-side one-time prep + wrapper
# --------------------------------------------------------------------------

def prepare_params(params, alpha, C, H, W):
    """Fold alpha and the F->G composition, cast matmul operands to bf16, and
    build the TV lane-scale vectors (mask * reciprocal denominator).  Done once
    per training configuration, reused across loss evaluations."""
    img = C * H * W
    W_FG = (params["W_F"] @ params["W_G"]) * alpha
    b_FG = (params["b_F"] @ params["W_G"] + params["b_G"]) * alpha
    lane = jnp.arange(img, dtype=jnp.int32)
    sw = jnp.where((lane % W) != (W - 1),
                   1.0 / (C * H * (W - 1)), 0.0).astype(jnp.float32).reshape(1, img)
    sh = jnp.where((lane % (H * W)) < ((H - 1) * W),
                   1.0 / (C * (H - 1) * W), 0.0).astype(jnp.float32).reshape(1, img)
    return {
        "W_F": params["W_F"].astype(jnp.bfloat16),
        "b_F": params["b_F"].astype(jnp.float32),
        "W_FG": W_FG.astype(jnp.bfloat16),
        "b_FG": b_FG.astype(jnp.float32),
        "W_E": params["W_E"].astype(jnp.bfloat16),
        "b_E": params["b_E"].astype(jnp.float32),
        "sw": sw, "sh": sh,
    }


def _vmem_limit_bytes():
    # Per-generation scoped-VMEM limit (v7x has only 64 MiB physical VMEM per
    # TensorCore) instead of a hardcoded 32 MiB; safe fallback if unavailable.
    try:
        return min(pltpu.get_tpu_info().vmem_capacity_bytes // 2, 64 * 1024 * 1024)
    except Exception:  # info query not available on this backend/version
        return 32 * 1024 * 1024


def autoencoder_loss_forward(z, prep, scale, n_layers, C, H, W):
    """Equivalent of AutoEncoderLoss(loss_fn=MSE, use_tv=True).forward(...) on
    the labels=None path.  alpha is already folded into `prep`."""
    del scale, n_layers  # labels=None path: layer-repeat elided, scale unused
    B, latent = z.shape
    img = C * H * W

    # Sublane-align the batch (multiple of 8); padded rows are masked in-kernel.
    B_pad = ((B + 7) // 8) * 8
    z_bf = jnp.pad(z, ((0, B_pad - B), (0, 0))).astype(jnp.bfloat16)

    kernel = functools.partial(_fused_autoencoder_loss_kernel, b_real=B, w=W)

    flops = (2 * B_pad * latent * latent        # F matmul
             + 2 * B_pad * latent * img         # fused F·G matmul
             + 2 * B_pad * img * latent         # E matmul
             + 20 * B_pad * img)                # TV / MSE elementwise
    bytes_accessed = (2 * (z_bf.size + prep["W_F"].size + prep["W_FG"].size
                           + prep["W_E"].size)
                      + 4 * (prep["b_F"].size + prep["b_FG"].size
                             + prep["b_E"].size + prep["sw"].size
                             + prep["sh"].size + 1))

    # TODO(synk): at production sizes (W_FG / W_E no longer VMEM-resident) split
    #             into a K/N-tiled grid with an f32 VMEM accumulator, 128-aligned
    #             tiles on v5e / 256 on v6e-v7x, double-buffered tiles sized for
    #             v7x's 64 MiB VMEM, and a "parallel" img-tile grid axis (with a
    #             1-column TV halo) so both v7x TensorCores are used.
    # TODO(synk): if many loss evaluations / a larger real batch exist, add a
    #             batch-chunk grid axis on this same pallas_call to amortize
    #             launch overhead instead of one call per tiny batch.
    out = pl.pallas_call(
        kernel,
        out_shape=jax.ShapeDtypeStruct((1,), jnp.float32),
        in_specs=[pl.BlockSpec(memory_space=pltpu.VMEM)] * 9,
        out_specs=pl.BlockSpec(memory_space=pltpu.SMEM),
        compiler_params=pltpu.CompilerParams(vmem_limit_bytes=_vmem_limit_bytes()),
        cost_estimate=pl.CostEstimate(
            flops=flops, transcendentals=0, bytes_accessed=bytes_accessed),
    )(z_bf, prep["W_F"], prep["b_F"], prep["W_FG"], prep["b_FG"],
      prep["W_E"], prep["b_E"], prep["sw"], prep["sh"])
    return out[0]


# --------------------------------------------------------------------------
# Synthetic F / G / E parameters (deterministic)
# --------------------------------------------------------------------------

def init_params(key, latent, C, H, W):
    k1, k2, k3, k4, k5, k6 = jax.random.split(key, 6)
    img = C * H * W
    return {
        "W_F": 0.05 * jax.random.normal(k1, (latent, latent), jnp.float32),
        "b_F": 0.01 * jax.random.normal(k2, (1, latent), jnp.float32),
        "W_G": 0.05 * jax.random.normal(k3, (latent, img), jnp.float32),
        "b_G": 0.01 * jax.random.normal(k4, (1, img), jnp.float32),
        "W_E": 0.05 * jax.random.normal(k5, (img, latent), jnp.float32),
        "b_E": 0.01 * jax.random.normal(k6, (1, latent), jnp.float32),
    }


# --------------------------------------------------------------------------
# References
# --------------------------------------------------------------------------

def reference_loss_f32(z, params, scale, alpha, n_layers, C, H, W):
    """Plain-JAX f32 reference mirroring the PyTorch module structure exactly
    (NCHW slicing, layer repeat, explicit alpha)."""
    del scale
    w_map = z @ params["W_F"] + params["b_F"]
    F_z = jnp.repeat(w_map[:, None, :], n_layers, axis=1)
    F_x = F_z[:, 0, :]
    img = (F_x @ params["W_G"] + params["b_G"]) * alpha
    B = img.shape[0]
    G_z = img.reshape(B, C, H, W)
    E_z = G_z.reshape(B, -1) @ params["W_E"] + params["b_E"]
    mse = jnp.mean((F_x - E_z) ** 2)
    tv = (jnp.mean(jnp.abs(G_z[:, :, :, :-1] - G_z[:, :, :, 1:]))
          + jnp.mean(jnp.abs(G_z[:, :, :-1, :] - G_z[:, :, 1:, :])))
    return mse + tv


def reference_loss_mixed(z, prep, W):
    """Plain-JAX reference with the kernel's exact precision choices (bf16 MXU
    operands, f32 accumulation / elementwise) — used for a tight assert."""
    B = z.shape[0]
    z_bf = z.astype(jnp.bfloat16)
    f_x = jnp.dot(z_bf, prep["W_F"], preferred_element_type=jnp.float32) + prep["b_F"]
    g_z = jnp.dot(z_bf, prep["W_FG"], preferred_element_type=jnp.float32) + prep["b_FG"]
    e_z = (jnp.dot(g_z.astype(jnp.bfloat16), prep["W_E"],
                   preferred_element_type=jnp.float32) + prep["b_E"])
    mse = jnp.mean((f_x - e_z) ** 2)
    tv = jnp.sum(jnp.abs(g_z - jnp.roll(g_z, -1, axis=1)) * prep["sw"]
                 + jnp.abs(g_z - jnp.roll(g_z, -W, axis=1)) * prep["sh"]) / B
    return mse + tv


# --------------------------------------------------------------------------

if __name__ == "__main__":
    B, latent, n_layers, C, H, W = 2, 32, 8, 4, 16, 16
    scale, alpha = 1.0, 1.0

    key = jax.random.PRNGKey(0)
    kz, kp = jax.random.split(key)
    z = jax.random.normal(kz, (B, latent), jnp.float32)
    params = init_params(kp, latent, C, H, W)
    prep = prepare_params(params, alpha, C, H, W)

    loss = autoencoder_loss_forward(z, prep, scale, n_layers, C, H, W)
    loss = jax.block_until_ready(loss)

    # Tight check against a reference using the kernel's own precision choices.
    ref_mixed = reference_loss_mixed(z, prep, W)
    assert jnp.allclose(loss, ref_mixed, atol=5e-5, rtol=2e-4), (loss, ref_mixed)

    # Looser check against the f32, PyTorch-faithful reference (the kernel uses
    # bf16 MXU operands, so a mixed-precision tolerance is expected here).
    ref_f32 = reference_loss_f32(z, params, scale, alpha, n_layers, C, H, W)
    assert jnp.allclose(loss, ref_f32, atol=2e-3, rtol=2e-2), (loss, ref_f32)

    print("KERNEL_OK")
</pallas_src>

<mosaic_0001>
module attributes {stable_mosaic.version = 11 : i64} {
  func.func @_fused_autoencoder_loss_kernel(%arg0: memref<8x32xbf16, #tpu.memory_space<vmem>>, %arg1: memref<32x32xbf16, #tpu.memory_space<vmem>>, %arg2: memref<1x32xf32, #tpu.memory_space<vmem>>, %arg3: memref<32x1024xbf16, #tpu.memory_space<vmem>>, %arg4: memref<1x1024xf32, #tpu.memory_space<vmem>>, %arg5: memref<1024x32xbf16, #tpu.memory_space<vmem>>, %arg6: memref<1x32xf32, #tpu.memory_space<vmem>>, %arg7: memref<1x1024xf32, #tpu.memory_space<vmem>>, %arg8: memref<1x1024xf32, #tpu.memory_space<vmem>>, %arg9: memref<1xf32, #tpu.memory_space<smem>>) attributes {dimension_semantics = [], scalar_prefetch = 0 : i64, scratch_operands = 0 : i64, tpu.core_type = #tpu.core_type<tc>} {
    %c0 = arith.constant 0 : index
    %c0_0 = arith.constant 0 : index
    %0 = vector.load %arg0[%c0, %c0_0] : memref<8x32xbf16, #tpu.memory_space<vmem>>, vector<8x32xbf16>
    %c0_1 = arith.constant 0 : index
    %c0_2 = arith.constant 0 : index
    %1 = vector.load %arg1[%c0_1, %c0_2] : memref<32x32xbf16, #tpu.memory_space<vmem>>, vector<32x32xbf16>
    %cst = arith.constant dense<0.000000e+00> : vector<8x32xf32>
    %2 = tpu.matmul %0, %1, %cst {dimension_numbers = #tpu.dot_dimension_numbers<[1], [0], [0], [1], [0, 0, 1, 1], [], []>} : vector<8x32xbf16>, vector<32x32xbf16>, vector<8x32xf32> -> vector<8x32xf32>
    %c0_3 = arith.constant 0 : index
    %c0_4 = arith.constant 0 : index
    %3 = vector.load %arg2[%c0_3, %c0_4] : memref<1x32xf32, #tpu.memory_space<vmem>>, vector<1x32xf32>
    %4 = vector.broadcast %3 : vector<1x32xf32> to vector<8x32xf32>
    %5 = arith.addf %2, %4 : vector<8x32xf32>
    %c0_5 = arith.constant 0 : index
    %c0_6 = arith.constant 0 : index
    %6 = vector.load %arg3[%c0_5, %c0_6] : memref<32x1024xbf16, #tpu.memory_space<vmem>>, vector<32x1024xbf16>
    %cst_7 = arith.constant dense<0.000000e+00> : vector<8x1024xf32>
    %7 = tpu.matmul %0, %6, %cst_7 {dimension_numbers = #tpu.dot_dimension_numbers<[1], [0], [0], [1], [0, 0, 1, 1], [], []>} : vector<8x32xbf16>, vector<32x1024xbf16>, vector<8x1024xf32> -> vector<8x1024xf32>
    %c0_8 = arith.constant 0 : index
    %c0_9 = arith.constant 0 : index
    %8 = vector.load %arg4[%c0_8, %c0_9] : memref<1x1024xf32, #tpu.memory_space<vmem>>, vector<1x1024xf32>
    %9 = vector.broadcast %8 : vector<1x1024xf32> to vector<8x1024xf32>
    %10 = arith.addf %7, %9 : vector<8x1024xf32>
    %11 = arith.truncf %10 : vector<8x1024xf32> to vector<8x1024xbf16>
    %c0_10 = arith.constant 0 : index
    %c0_11 = arith.constant 0 : index
    %12 = vector.load %arg5[%c0_10, %c0_11] : memref<1024x32xbf16, #tpu.memory_space<vmem>>, vector<1024x32xbf16>
    %cst_12 = arith.constant dense<0.000000e+00> : vector<8x32xf32>
    %13 = tpu.matmul %11, %12, %cst_12 {dimension_numbers = #tpu.dot_dimension_numbers<[1], [0], [0], [1], [0, 0, 1, 1], [], []>} : vector<8x1024xbf16>, vector<1024x32xbf16>, vector<8x32xf32> -> vector<8x32xf32>
    %c0_13 = arith.constant 0 : index
    %c0_14 = arith.constant 0 : index
    %14 = vector.load %arg6[%c0_13, %c0_14] : memref<1x32xf32, #tpu.memory_space<vmem>>, vector<1x32xf32>
    %15 = vector.broadcast %14 : vector<1x32xf32> to vector<8x32xf32>
    %16 = arith.addf %13, %15 : vector<8x32xf32>
    %17 = tpu.iota {dimensions = array<i32: 0>} : vector<8x1xi32>
    %c2_i32 = arith.constant 2 : i32
    %18 = vector.broadcast %c2_i32 : i32 to vector<8x1xi32>
    %19 = arith.cmpi slt, %17, %18 : vector<8x1xi32>
    %20 = arith.subf %5, %16 : vector<8x32xf32>
    %21 = arith.mulf %20, %20 : vector<8x32xf32>
    %cst_15 = arith.constant dense<0.000000e+00> : vector<8xf32>
    %22 = vector.multi_reduction <add>, %21, %cst_15 [1] : vector<8x32xf32> to vector<8xf32>
    %23 = vector.shape_cast %22 : vector<8xf32> to vector<8x1xf32>
    %cst_16 = arith.constant 3.125000e-02 : f32
    %24 = vector.broadcast %cst_16 : f32 to vector<8x1xf32>
    %25 = arith.mulf %23, %24 : vector<8x1xf32>
    %c1023_i32 = arith.constant 1023 : i32
    %26 = tpu.dynamic_rotate %10 by %c1023_i32 dim 1 : vector<8x1024xf32>, i32 -> vector<8x1024xf32>
    %c1008_i32 = arith.constant 1008 : i32
    %27 = tpu.dynamic_rotate %10 by %c1008_i32 dim 1 : vector<8x1024xf32>, i32 -> vector<8x1024xf32>
    %28 = arith.subf %10, %26 : vector<8x1024xf32>
    %29 = math.absf %28 : vector<8x1024xf32>
    %c0_17 = arith.constant 0 : index
    %c0_18 = arith.constant 0 : index
    %30 = vector.load %arg7[%c0_17, %c0_18] : memref<1x1024xf32, #tpu.memory_space<vmem>>, vector<1x1024xf32>
    %31 = vector.broadcast %30 : vector<1x1024xf32> to vector<8x1024xf32>
    %32 = arith.mulf %29, %31 : vector<8x1024xf32>
    %33 = arith.subf %10, %27 : vector<8x1024xf32>
    %34 = math.absf %33 : vector<8x1024xf32>
    %c0_19 = arith.constant 0 : index
    %c0_20 = arith.constant 0 : index
    %35 = vector.load %arg8[%c0_19, %c0_20] : memref<1x1024xf32, #tpu.memory_space<vmem>>, vector<1x1024xf32>
    %36 = vector.broadcast %35 : vector<1x1024xf32> to vector<8x1024xf32>
    %37 = arith.mulf %34, %36 : vector<8x1024xf32>
    %38 = arith.addf %32, %37 : vector<8x1024xf32>
    %cst_21 = arith.constant dense<0.000000e+00> : vector<8xf32>
    %39 = vector.multi_reduction <add>, %38, %cst_21 [1] : vector<8x1024xf32> to vector<8xf32>
    %40 = vector.shape_cast %39 : vector<8xf32> to vector<8x1xf32>
    %41 = arith.addf %25, %40 : vector<8x1xf32>
    %cst_22 = arith.constant 0.000000e+00 : f32
    %42 = vector.broadcast %cst_22 : f32 to vector<8x1xf32>
    %43 = arith.select %19, %41, %42 : vector<8x1xi1>, vector<8x1xf32>
    %44 = vector.shape_cast %43 : vector<8x1xf32> to vector<1x8x1xf32>
    %cst_23 = arith.constant dense<0.000000e+00> : vector<1xf32>
    %45 = vector.multi_reduction <add>, %44, %cst_23 [1, 2] : vector<1x8x1xf32> to vector<1xf32>
    %46 = vector.shape_cast %45 : vector<1xf32> to vector<1x1x1xf32>
    %47 = vector.extract %46[0, 0, 0] : f32 from vector<1x1x1xf32>
    %cst_24 = arith.constant 5.000000e-01 : f32
    %48 = arith.mulf %47, %cst_24 : f32
    %c0_25 = arith.constant 0 : index
    %49 = memref.load %arg9[%c0_25] : memref<1xf32, #tpu.memory_space<smem>>
    memref.store %48, %arg9[%c0_25] : memref<1xf32, #tpu.memory_space<smem>>
    return
  }
}

</mosaic_0001>

<llo_original>
// kernel: tpu_custom_call.1
$region0: #{tpu_custom_call.1}
  #allocation0 [shape = 'u32[]', space=smem, size = 0x4, offset = 0x4, fixed_abs, tag = 'smem constant byte address 0x4 - core index']
  #allocation1 [shape = 'u32[72,128]{1,0:T(1,128)}', space=vmem, size = 0x9000, scoped, tag = 'internal scratch']
  %s0 = inlined_call_operand.vmem [shape: bf16[8,32], index: 0, kind: input, shape index: {}]
  %s1 = inlined_call_operand.vmem [shape: bf16[32,32], index: 1, kind: input, shape index: {}]
  %s2 = inlined_call_operand.vmem [shape: f32[1,32], index: 2, kind: input, shape index: {}]
  %s3 = inlined_call_operand.vmem [shape: bf16[32,1024], index: 3, kind: input, shape index: {}]
  %s4 = inlined_call_operand.vmem [shape: f32[1,1024], index: 4, kind: input, shape index: {}]
  %s5 = inlined_call_operand.vmem [shape: bf16[1024,32], index: 5, kind: input, shape index: {}]
  %s6 = inlined_call_operand.vmem [shape: f32[1,32], index: 6, kind: input, shape index: {}]
  %s7 = inlined_call_operand.vmem [shape: f32[1,1024], index: 7, kind: input, shape index: {}]
  %s8 = inlined_call_operand.vmem [shape: f32[1,1024], index: 8, kind: input, shape index: {}]
  %s9 = inlined_call_operand.hbm [shape: f32[1], index: 9, kind: output, shape index: {}]
  %s10 = sld [smem:[#allocation0]]
  $region46: #{tpu_custom_call.1} parent=0
    _
  %s12 = ssub.s32 1, %s10
  %s13 = scalar_select 0, %s12, %s10
  $region1: #{tpu_custom_call.1} parent=0
    #allocation2 [shape = 'u8[512]{0}', space=smem, size = 0x200, scoped, tag = 'output window, operand 0, single buffered']
    #allocation3 [shape = 's32[1]{0}', space=sflag, size = 0x4, scoped, tag = 'scoped memory for tpu_custom_call.1']
    %14 = vsyncpa [#allocation3], 0
    // Predicated region
    $region2: #{tpu_custom_call.1} parent=1 // pred_check
      _
    $region3: #{tpu_custom_call.1} parent=1 // pred_check_branch
      %16 = sbr.rel (0) target = $region5
    $region4: #{tpu_custom_call.1} parent=1 // pred_region
      _
    $region5: #{tpu_custom_call.1} parent=1 // pred_fallthru
      _
    // Predicated region
    $region6: #{tpu_custom_call.1} parent=1 // pred_check
      _
    $region7: #{tpu_custom_call.1} parent=1 // pred_check_branch
      %18 = sbr.rel (0) target = $region9
    $region8: #{tpu_custom_call.1} parent=1 // pred_region
      _
    $region9: #{tpu_custom_call.1} parent=1 // pred_fallthru
      _
    // Predicated region
    $region10: #{tpu_custom_call.1} parent=1 // pred_check
      _
    $region11: #{tpu_custom_call.1} parent=1 // pred_check_branch
      %20 = sbr.rel (0) target = $region13
    $region12: #{tpu_custom_call.1} parent=1 // pred_region
      _
    $region13: #{tpu_custom_call.1} parent=1 // pred_fallthru
      _
    // Predicated region
    $region14: #{tpu_custom_call.1} parent=1 // pred_check
      _
    $region15: #{tpu_custom_call.1} parent=1 // pred_check_branch
      %22 = sbr.rel (0) target = $region17
    $region16: #{tpu_custom_call.1} parent=1 // pred_region
      _
    $region17: #{tpu_custom_call.1} parent=1 // pred_fallthru
      _
    // Predicated region
    $region18: #{tpu_custom_call.1} parent=1 // pred_check
      _
    $region19: #{tpu_custom_call.1} parent=1 // pred_check_branch
      %24 = sbr.rel (0) target = $region21
    $region20: #{tpu_custom_call.1} parent=1 // pred_region
      _
    $region21: #{tpu_custom_call.1} parent=1 // pred_fallthru
      _
    // Predicated region
    $region22: #{tpu_custom_call.1} parent=1 // pred_check
      _
    $region23: #{tpu_custom_call.1} parent=1 // pred_check_branch
      %26 = sbr.rel (0) target = $region25
    $region24: #{tpu_custom_call.1} parent=1 // pred_region
      _
    $region25: #{tpu_custom_call.1} parent=1 // pred_fallthru
      _
    // Predicated region
    $region26: #{tpu_custom_call.1} parent=1 // pred_check
      _
    $region27: #{tpu_custom_call.1} parent=1 // pred_check_branch
      %28 = sbr.rel (0) target = $region29
    $region28: #{tpu_custom_call.1} parent=1 // pred_region
      _
    $region29: #{tpu_custom_call.1} parent=1 // pred_fallthru
      _
    // Predicated region
    $region30: #{tpu_custom_call.1} parent=1 // pred_check
      _
    $region31: #{tpu_custom_call.1} parent=1 // pred_check_branch
      %30 = sbr.rel (0) target = $region33
    $region32: #{tpu_custom_call.1} parent=1 // pred_region
      _
    $region33: #{tpu_custom_call.1} parent=1 // pred_fallthru
      _
    // Predicated region
    $region34: #{tpu_custom_call.1} parent=1 // pred_check
      _
    $region35: #{tpu_custom_call.1} parent=1 // pred_check_branch
      %32 = sbr.rel (0) target = $region37
    $region36: #{tpu_custom_call.1} parent=1 // pred_region
      _
    $region37: #{tpu_custom_call.1} parent=1 // pred_fallthru
      _
    %v34 = vld [vmem:[%s0] sm:$0xf]
    %v35 = vld [vmem:[%s1] sm:$0xf]
    %v36 = vld [vmem:[%s1 + $0x4] sm:$0xf]
    %v37 = vld [vmem:[%s1 + $0x8] sm:$0xf]
    %v38 = vld [vmem:[%s1 + $0xc] sm:$0xf]
    %v39 = vld [vmem:[%s2] sm:$0x1]
    %v41 = vperm.slane %v39, 0
    %v47 = vunpack.c.l.b16 %v35
    %v48 = vunpack.c.l.b16 %v36
    %v49 = vunpack.c.l.b16 %v37
    %v50 = vunpack.c.l.b16 %v38
    %v51 = vpack.c.b16 %v48, %v47
    %v52 = vpack.c.b16 %v50, %v49
    %vm55 = vcmask 261120
    %v57 = vsel %vm55, %v34, 0
    %59 = vmatpush.bf16.msra.mxu0 0
    %60 = vmatpush.bf16.msra.mxu0 0
    %61 = vmatpush.bf16.msra.mxu0 0
    %62 = vmatpush.bf16.msra.mxu0 0
    %63 = vmatpush.bf16.msra.mxu0 0
    %64 = vmatpush.bf16.msra.mxu0 0
    %65 = vmatpush.bf16.msra.mxu0 %v52
    %66 = vmatpush.bf16.msra.mxu0 %v51
    %67 = vmatmul.bf16.gmra.mxu0 %v57
    %v68 = vpop.f32.mrf.mxu0
    %v69 = vadd.f32 %v41, %v68
    %v70 = vpop.f32.mrf.mxu0
    %71 = vdwg.mxu0
    %v72 = vld [vmem:[%s3] sm:$0xff]
    %v73 = vld [vmem:[%s3 + $0x8] sm:$0xff]
    %v74 = vld [vmem:[%s3 + $0x10] sm:$0xff]
    %v75 = vld [vmem:[%s3 + $0x18] sm:$0xff]
    %v76 = vld [vmem:[%s3 + $0x20] sm:$0xff]
    %v77 = vld [vmem:[%s3 + $0x28] sm:$0xff]
    %v78 = vld [vmem:[%s3 + $0x30] sm:$0xff]
    %v79 = vld [vmem:[%s3 + $0x38] sm:$0xff]
    %v80 = vld [vmem:[%s3 + $0x40] sm:$0xff]
    %v81 = vld [vmem:[%s3 + $0x48] sm:$0xff]
    %v82 = vld [vmem:[%s3 + $0x50] sm:$0xff]
    %v83 = vld [vmem:[%s3 + $0x58] sm:$0xff]
    %v84 = vld [vmem:[%s3 + $0x60] sm:$0xff]
    %v85 = vld [vmem:[%s3 + $0x68] sm:$0xff]
    %v86 = vld [vmem:[%s3 + $0x70] sm:$0xff]
    %v87 = vld [vmem:[%s3 + $0x78] sm:$0xff]
    %v88 = vld [vmem:[%s4] sm:$0xff]
    %v90 = vperm.slane %v88, 0
    %v91 = vperm.slane %v88, 1
    %v92 = vperm.slane %v88, 2
    %v93 = vperm.slane %v88, 3
    %v94 = vperm.slane %v88, 4
    %v95 = vperm.slane %v88, 5
    %v96 = vperm.slane %v88, 6
    %v97 = vperm.slane %v88, 7
    %v122 = vunpack.c.l.b16 %v72
    %v123 = vunpack.c.h.b16 %v72
    %v124 = vunpack.c.l.b16 %v73
    %v125 = vunpack.c.h.b16 %v73
    %v126 = vunpack.c.l.b16 %v74
    %v127 = vunpack.c.h.b16 %v74
    %v128 = vunpack.c.l.b16 %v75
    %v129 = vunpack.c.h.b16 %v75
    %v130 = vunpack.c.l.b16 %v76
    %v131 = vunpack.c.h.b16 %v76
    %v132 = vunpack.c.l.b16 %v77
    %v133 = vunpack.c.h.b16 %v77
    %v134 = vunpack.c.l.b16 %v78
    %v135 = vunpack.c.h.b16 %v78
    %v136 = vunpack.c.l.b16 %v79
    %v137 = vunpack.c.h.b16 %v79
    %v138 = vunpack.c.l.b16 %v80
    %v139 = vunpack.c.h.b16 %v80
    %v140 = vunpack.c.l.b16 %v81
    %v141 = vunpack.c.h.b16 %v81
    %v142 = vunpack.c.l.b16 %v82
    %v143 = vunpack.c.h.b16 %v82
    %v144 = vunpack.c.l.b16 %v83
    %v145 = vunpack.c.h.b16 %v83
    %v146 = vunpack.c.l.b16 %v84
    %v147 = vunpack.c.h.b16 %v84
    %v148 = vunpack.c.l.b16 %v85
    %v149 = vunpack.c.h.b16 %v85
    %v150 = vunpack.c.l.b16 %v86
    %v151 = vunpack.c.h.b16 %v86
    %v152 = vunpack.c.l.b16 %v87
    %v153 = vunpack.c.h.b16 %v87
    %v154 = vpack.c.b16 %v130, %v122
    %v155 = vpack.c.b16 %v131, %v123
    %v156 = vpack.c.b16 %v132, %v124
    %v157 = vpack.c.b16 %v133, %v125
    %v158 = vpack.c.b16 %v134, %v126
    %v159 = vpack.c.b16 %v135, %v127
    %v160 = vpack.c.b16 %v136, %v128
    %v161 = vpack.c.b16 %v137, %v129
    %v162 = vpack.c.b16 %v146, %v138
    %v163 = vpack.c.b16 %v147, %v139
    %v164 = vpack.c.b16 %v148, %v140
    %v165 = vpack.c.b16 %v149, %v141
    %v166 = vpack.c.b16 %v150, %v142
    %v167 = vpack.c.b16 %v151, %v143
    %v168 = vpack.c.b16 %v152, %v144
    %v169 = vpack.c.b16 %v153, %v145
    %186 = vmatpush.bf16.msra.mxu0 0
    %187 = vmatpush.bf16.msra.mxu0 0
    %188 = vmatpush.bf16.msra.mxu0 0
    %189 = vmatpush.bf16.msra.mxu0 0
    %190 = vmatpush.bf16.msra.mxu0 0
    %191 = vmatpush.bf16.msra.mxu0 0
    %192 = vmatpush.bf16.msra.mxu0 %v162
    %193 = vmatpush.bf16.msra.mxu0 %v154
    %194 = vmatmul.bf16.gmra.mxu0 %v57
    %v195 = vpop.f32.mrf.mxu0
    %v196 = vadd.f32 %v90, %v195
    %v197 = vpop.f32.mrf.mxu0
    %198 = vdwg.mxu0
    %199 = vmatpush.bf16.msra.mxu0 0
    %200 = vmatpush.bf16.msra.mxu0 0
    %201 = vmatpush.bf16.msra.mxu0 0
    %202 = vmatpush.bf16.msra.mxu0 0
    %203 = vmatpush.bf16.msra.mxu0 0
    %204 = vmatpush.bf16.msra.mxu0 0
    %205 = vmatpush.bf16.msra.mxu0 %v163
    %206 = vmatpush.bf16.msra.mxu0 %v155
    %207 = vmatmul.bf16.gmra.mxu0 %v57
    %v208 = vpop.f32.mrf.mxu0
    %v209 = vadd.f32 %v91, %v208
    %v210 = vpop.f32.mrf.mxu0
    %211 = vdwg.mxu0
    %212 = vmatpush.bf16.msra.mxu0 0
    %213 = vmatpush.bf16.msra.mxu0 0
    %214 = vmatpush.bf16.msra.mxu0 0
    %215 = vmatpush.bf16.msra.mxu0 0
    %216 = vmatpush.bf16.msra.mxu0 0
    %217 = vmatpush.bf16.msra.mxu0 0
    %218 = vmatpush.bf16.msra.mxu0 %v164
    %219 = vmatpush.bf16.msra.mxu0 %v156
    %220 = vmatmul.bf16.gmra.mxu0 %v57
    %v221 = vpop.f32.mrf.mxu0
    %v222 = vadd.f32 %v92, %v221
    %v223 = vpop.f32.mrf.mxu0
    %224 = vdwg.mxu0
    %225 = vmatpush.bf16.msra.mxu0 0
    %226 = vmatpush.bf16.msra.mxu0 0
    %227 = vmatpush.bf16.msra.mxu0 0
    %228 = vmatpush.bf16.msra.mxu0 0
    %229 = vmatpush.bf16.msra.mxu0 0
    %230 = vmatpush.bf16.msra.mxu0 0
    %231 = vmatpush.bf16.msra.mxu0 %v165
    %232 = vmatpush.bf16.msra.mxu0 %v157
    %233 = vmatmul.bf16.gmra.mxu0 %v57
    %v234 = vpop.f32.mrf.mxu0
    %v235 = vadd.f32 %v93, %v234
    %v236 = vpop.f32.mrf.mxu0
    %237 = vdwg.mxu0
    %238 = vmatpush.bf16.msra.mxu0 0
    %239 = vmatpush.bf16.msra.mxu0 0
    %240 = vmatpush.bf16.msra.mxu0 0
    %241 = vmatpush.bf16.msra.mxu0 0
    %242 = vmatpush.bf16.msra.mxu0 0
    %243 = vmatpush.bf16.msra.mxu0 0
    %244 = vmatpush.bf16.msra.mxu0 %v166
    %245 = vmatpush.bf16.msra.mxu0 %v158
    %246 = vmatmul.bf16.gmra.mxu0 %v57
    %v247 = vpop.f32.mrf.mxu0
    %v248 = vadd.f32 %v94, %v247
    %v249 = vpop.f32.mrf.mxu0
    %250 = vdwg.mxu0
    %251 = vmatpush.bf16.msra.mxu0 0
    %252 = vmatpush.bf16.msra.mxu0 0
    %253 = vmatpush.bf16.msra.mxu0 0
    %254 = vmatpush.bf16.msra.mxu0 0
    %255 = vmatpush.bf16.msra.mxu0 0
    %256 = vmatpush.bf16.msra.mxu0 0
    %257 = vmatpush.bf16.msra.mxu0 %v167
    %258 = vmatpush.bf16.msra.mxu0 %v159
    %259 = vmatmul.bf16.gmra.mxu0 %v57
    %v260 = vpop.f32.mrf.mxu0
    %v261 = vadd.f32 %v95, %v260
    %v262 = vpop.f32.mrf.mxu0
    %263 = vdwg.mxu0
    %264 = vmatpush.bf16.msra.mxu0 0
    %265 = vmatpush.bf16.msra.mxu0 0
    %266 = vmatpush.bf16.msra.mxu0 0
    %267 = vmatpush.bf16.msra.mxu0 0
    %268 = vmatpush.bf16.msra.mxu0 0
    %269 = vmatpush.bf16.msra.mxu0 0
    %270 = vmatpush.bf16.msra.mxu0 %v168
    %271 = vmatpush.bf16.msra.mxu0 %v160
    %272 = vmatmul.bf16.gmra.mxu0 %v57
    %v273 = vpop.f32.mrf.mxu0
    %v274 = vadd.f32 %v96, %v273
    %v275 = vpop.f32.mrf.mxu0
    %276 = vdwg.mxu0
    %277 = vmatpush.bf16.msra.mxu0 0
    %278 = vmatpush.bf16.msra.mxu0 0
    %279 = vmatpush.bf16.msra.mxu0 0
    %280 = vmatpush.bf16.msra.mxu0 0
    %281 = vmatpush.bf16.msra.mxu0 0
    %282 = vmatpush.bf16.msra.mxu0 0
    %283 = vmatpush.bf16.msra.mxu0 %v169
    %284 = vmatpush.bf16.msra.mxu0 %v161
    %285 = vmatmul.bf16.gmra.mxu0 %v57
    %v286 = vpop.f32.mrf.mxu0
    %v287 = vadd.f32 %v97, %v286
    %v288 = vpop.f32.mrf.mxu0
    %289 = vdwg.mxu0
    %v290 = vpack.c.bf16 %v196, %v196
    %v291 = vpack.c.bf16 %v209, %v209
    %v292 = vpack.c.bf16 %v222, %v222
    %v293 = vpack.c.bf16 %v235, %v235
    %v294 = vpack.c.bf16 %v248, %v248
    %v295 = vpack.c.bf16 %v261, %v261
    %v296 = vpack.c.bf16 %v274, %v274
    %v297 = vpack.c.bf16 %v287, %v287
    %v298 = vld [vmem:[%s5] sm:$0xf]
    %v299 = vld [vmem:[%s5 + $0x4] sm:$0xf]
    %v300 = vld [vmem:[%s5 + $0x8] sm:$0xf]
    %v301 = vld [vmem:[%s5 + $0xc] sm:$0xf]
    %v302 = vld [vmem:[%s5 + $0x10] sm:$0xf]
    %v303 = vld [vmem:[%s5 + $0x14] sm:$0xf]
    %v304 = vld [vmem:[%s5 + $0x18] sm:$0xf]
    %v305 = vld [vmem:[%s5 + $0x1c] sm:$0xf]
    %v306 = vld [vmem:[%s5 + $0x20] sm:$0xf]
    %v307 = vld [vmem:[%s5 + $0x24] sm:$0xf]
    %v308 = vld [vmem:[%s5 + $0x28] sm:$0xf]
    %v309 = vld [vmem:[%s5 + $0x2c] sm:$0xf]
    %v310 = vld [vmem:[%s5 + $0x30] sm:$0xf]
    %v311 = vld [vmem:[%s5 + $0x34] sm:$0xf]
    %v312 = vld [vmem:[%s5 + $0x38] sm:$0xf]
    %v313 = vld [vmem:[%s5 + $0x3c] sm:$0xf]
    %v314 = vld [vmem:[%s5 + $0x40] sm:$0xf]
    %v315 = vld [vmem:[%s5 + $0x44] sm:$0xf]
    %v316 = vld [vmem:[%s5 + $0x48] sm:$0xf]
    %v317 = vld [vmem:[%s5 + $0x4c] sm:$0xf]
    %v318 = vld [vmem:[%s5 + $0x50] sm:$0xf]
    %v319 = vld [vmem:[%s5 + $0x54] sm:$0xf]
    %v320 = vld [vmem:[%s5 + $0x58] sm:$0xf]
    %v321 = vld [vmem:[%s5 + $0x5c] sm:$0xf]
    %v322 = vld [vmem:[%s5 + $0x60] sm:$0xf]
    %v323 = vld [vmem:[%s5 + $0x64] sm:$0xf]
    %v324 = vld [vmem:[%s5 + $0x68] sm:$0xf]
    %v325 = vld [vmem:[%s5 + $0x6c] sm:$0xf]
    %v326 = vld [vmem:[%s5 + $0x70] sm:$0xf]
    %v327 = vld [vmem:[%s5 + $0x74] sm:$0xf]
    %v328 = vld [vmem:[%s5 + $0x78] sm:$0xf]
    %v329 = vld [vmem:[%s5 + $0x7c] sm:$0xf]
    %v330 = vld [vmem:[%s5 + $0x80] sm:$0xf]
    %v331 = vld [vmem:[%s5 + $0x84] sm:$0xf]
    %v332 = vld [vmem:[%s5 + $0x88] sm:$0xf]
    %v333 = vld [vmem:[%s5 + $0x8c] sm:$0xf]
    %v334 = vld [vmem:[%s5 + $0x90] sm:$0xf]
    %v335 = vld [vmem:[%s5 + $0x94] sm:$0xf]
    %v336 = vld [vmem:[%s5 + $0x98] sm:$0xf]
    %v337 = vld [vmem:[%s5 + $0x9c] sm:$0xf]
    %v338 = vld [vmem:[%s5 + $0xa0] sm:$0xf]
    %v339 = vld [vmem:[%s5 + $0xa4] sm:$0xf]
    %v340 = vld [vmem:[%s5 + $0xa8] sm:$0xf]
    %v341 = vld [vmem:[%s5 + $0xac] sm:$0xf]
    %v342 = vld [vmem:[%s5 + $0xb0] sm:$0xf]
    %v343 = vld [vmem:[%s5 + $0xb4] sm:$0xf]
    %v344 = vld [vmem:[%s5 + $0xb8] sm:$0xf]
    %v345 = vld [vmem:[%s5 + $0xbc] sm:$0xf]
    %v346 = vld [vmem:[%s5 + $0xc0] sm:$0xf]
    %v347 = vld [vmem:[%s5 + $0xc4] sm:$0xf]
    %v348 = vld [vmem:[%s5 + $0xc8] sm:$0xf]
    %v349 = vld [vmem:[%s5 + $0xcc] sm:$0xf]
    %v350 = vld [vmem:[%s5 + $0xd0] sm:$0xf]
    %v351 = vld [vmem:[%s5 + $0xd4] sm:$0xf]
    %v352 = vld [vmem:[%s5 + $0xd8] sm:$0xf]
    %v353 = vld [vmem:[%s5 + $0xdc] sm:$0xf]
    %v354 = vld [vmem:[%s5 + $0xe0] sm:$0xf]
    %v355 = vld [vmem:[%s5 + $0xe4] sm:$0xf]
    %v356 = vld [vmem:[%s5 + $0xe8] sm:$0xf]
    %v357 = vld [vmem:[%s5 + $0xec] sm:$0xf]
    %v358 = vld [vmem:[%s5 + $0xf0] sm:$0xf]
    %v359 = vld [vmem:[%s5 + $0xf4] sm:$0xf]
    %v360 = vld [vmem:[%s5 + $0xf8] sm:$0xf]
    %v361 = vld [vmem:[%s5 + $0xfc] sm:$0xf]
    %v362 = vld [vmem:[%s5 + $0x100] sm:$0xf]
    %v363 = vld [vmem:[%s5 + $0x104] sm:$0xf]
    %v364 = vld [vmem:[%s5 + $0x108] sm:$0xf]
    %v365 = vld [vmem:[%s5 + $0x10c] sm:$0xf]
    %v366 = vld [vmem:[%s5 + $0x110] sm:$0xf]
    %v367 = vld [vmem:[%s5 + $0x114] sm:$0xf]
    %v368 = vld [vmem:[%s5 + $0x118] sm:$0xf]
    %v369 = vld [vmem:[%s5 + $0x11c] sm:$0xf]
    %v370 = vld [vmem:[%s5 + $0x120] sm:$0xf]
    %v371 = vld [vmem:[%s5 + $0x124] sm:$0xf]
    %v372 = vld [vmem:[%s5 + $0x128] sm:$0xf]
    %v373 = vld [vmem:[%s5 + $0x12c] sm:$0xf]
    %v374 = vld [vmem:[%s5 + $0x130] sm:$0xf]
    %v375 = vld [vmem:[%s5 + $0x134] sm:$0xf]
    %v376 = vld [vmem:[%s5 + $0x138] sm:$0xf]
    %v377 = vld [vmem:[%s5 + $0x13c] sm:$0xf]
    %v378 = vld [vmem:[%s5 + $0x140] sm:$0xf]
    %v379 = vld [vmem:[%s5 + $0x144] sm:$0xf]
    %v380 = vld [vmem:[%s5 + $0x148] sm:$0xf]
    %v381 = vld [vmem:[%s5 + $0x14c] sm:$0xf]
    %v382 = vld [vmem:[%s5 + $0x150] sm:$0xf]
    %v383 = vld [vmem:[%s5 + $0x154] sm:$0xf]
    %v384 = vld [vmem:[%s5 + $0x158] sm:$0xf]
    %v385 = vld [vmem:[%s5 + $0x15c] sm:$0xf]
    %v386 = vld [vmem:[%s5 + $0x160] sm:$0xf]
    %v387 = vld [vmem:[%s5 + $0x164] sm:$0xf]
    %v388 = vld [vmem:[%s5 + $0x168] sm:$0xf]
    %v389 = vld [vmem:[%s5 + $0x16c] sm:$0xf]
    %v390 = vld [vmem:[%s5 + $0x170] sm:$0xf]
    %v391 = vld [vmem:[%s5 + $0x174] sm:$0xf]
    %v392 = vld [vmem:[%s5 + $0x178] sm:$0xf]
    %v393 = vld [vmem:[%s5 + $0x17c] sm:$0xf]
    %v394 = vld [vmem:[%s5 + $0x180] sm:$0xf]
    %v395 = vld [vmem:[%s5 + $0x184] sm:$0xf]
    %v396 = vld [vmem:[%s5 + $0x188] sm:$0xf]
    %v397 = vld [vmem:[%s5 + $0x18c] sm:$0xf]
    %v398 = vld [vmem:[%s5 + $0x190] sm:$0xf]
    %v399 = vld [vmem:[%s5 + $0x194] sm:$0xf]
    %v400 = vld [vmem:[%s5 + $0x198] sm:$0xf]
    %v401 = vld [vmem:[%s5 + $0x19c] sm:$0xf]
    %v402 = vld [vmem:[%s5 + $0x1a0] sm:$0xf]
    %v403 = vld [vmem:[%s5 + $0x1a4] sm:$0xf]
    %v404 = vld [vmem:[%s5 + $0x1a8] sm:$0xf]
    %v405 = vld [vmem:[%s5 + $0x1ac] sm:$0xf]
    %v406 = vld [vmem:[%s5 + $0x1b0] sm:$0xf]
    %v407 = vld [vmem:[%s5 + $0x1b4] sm:$0xf]
    %v408 = vld [vmem:[%s5 + $0x1b8] sm:$0xf]
    %v409 = vld [vmem:[%s5 + $0x1bc] sm:$0xf]
    %v410 = vld [vmem:[%s5 + $0x1c0] sm:$0xf]
    %v411 = vld [vmem:[%s5 + $0x1c4] sm:$0xf]
    %v412 = vld [vmem:[%s5 + $0x1c8] sm:$0xf]
    %v413 = vld [vmem:[%s5 + $0x1cc] sm:$0xf]
    %v414 = vld [vmem:[%s5 + $0x1d0] sm:$0xf]
    %v415 = vld [vmem:[%s5 + $0x1d4] sm:$0xf]
    %v416 = vld [vmem:[%s5 + $0x1d8] sm:$0xf]
    %v417 = vld [vmem:[%s5 + $0x1dc] sm:$0xf]
    %v418 = vld [vmem:[%s5 + $0x1e0] sm:$0xf]
    %v419 = vld [vmem:[%s5 + $0x1e4] sm:$0xf]
    %v420 = vld [vmem:[%s5 + $0x1e8] sm:$0xf]
    %v421 = vld [vmem:[%s5 + $0x1ec] sm:$0xf]
    %v422 = vld [vmem:[%s5 + $0x1f0] sm:$0xf]
    %v423 = vld [vmem:[%s5 + $0x1f4] sm:$0xf]
    %v424 = vld [vmem:[%s5 + $0x1f8] sm:$0xf]
    %v425 = vld [vmem:[%s5 + $0x1fc] sm:$0xf]
    %v426 = vld [vmem:[%s6] sm:$0x1]
    %v428 = vperm.slane %v426, 0
    %v558 = vunpack.c.l.b16 %v298
    %v559 = vunpack.c.l.b16 %v299
    %v560 = vunpack.c.l.b16 %v300
    %v561 = vunpack.c.l.b16 %v301
    %v562 = vunpack.c.l.b16 %v302
    %v563 = vunpack.c.l.b16 %v303
    %v564 = vunpack.c.l.b16 %v304
    %v565 = vunpack.c.l.b16 %v305
    %v566 = vunpack.c.l.b16 %v306
    %v567 = vunpack.c.l.b16 %v307
    %v568 = vunpack.c.l.b16 %v308
    %v569 = vunpack.c.l.b16 %v309
    %v570 = vunpack.c.l.b16 %v310
    %v571 = vunpack.c.l.b16 %v311
    %v572 = vunpack.c.l.b16 %v312
    %v573 = vunpack.c.l.b16 %v313
    %v574 = vunpack.c.l.b16 %v314
    %v575 = vunpack.c.l.b16 %v315
    %v576 = vunpack.c.l.b16 %v316
    %v577 = vunpack.c.l.b16 %v317
    %v578 = vunpack.c.l.b16 %v318
    %v579 = vunpack.c.l.b16 %v319
    %v580 = vunpack.c.l.b16 %v320
    %v581 = vunpack.c.l.b16 %v321
    %v582 = vunpack.c.l.b16 %v322
    %v583 = vunpack.c.l.b16 %v323
    %v584 = vunpack.c.l.b16 %v324
    %v585 = vunpack.c.l.b16 %v325
    %v586 = vunpack.c.l.b16 %v326
    %v587 = vunpack.c.l.b16 %v327
    %v588 = vunpack.c.l.b16 %v328
    %v589 = vunpack.c.l.b16 %v329
    %v590 = vunpack.c.l.b16 %v330
    %v591 = vunpack.c.l.b16 %v331
    %v592 = vunpack.c.l.b16 %v332
    %v593 = vunpack.c.l.b16 %v333
    %v594 = vunpack.c.l.b16 %v334
    %v595 = vunpack.c.l.b16 %v335
    %v596 = vunpack.c.l.b16 %v336
    %v597 = vunpack.c.l.b16 %v337
    %v598 = vunpack.c.l.b16 %v338
    %v599 = vunpack.c.l.b16 %v339
    %v600 = vunpack.c.l.b16 %v340
    %v601 = vunpack.c.l.b16 %v341
    %v602 = vunpack.c.l.b16 %v342
    %v603 = vunpack.c.l.b16 %v343
    %v604 = vunpack.c.l.b16 %v344
    %v605 = vunpack.c.l.b16 %v345
    %v606 = vunpack.c.l.b16 %v346
    %v607 = vunpack.c.l.b16 %v347
    %v608 = vunpack.c.l.b16 %v348
    %v609 = vunpack.c.l.b16 %v349
    %v610 = vunpack.c.l.b16 %v350
    %v611 = vunpack.c.l.b16 %v351
    %v612 = vunpack.c.l.b16 %v352
    %v613 = vunpack.c.l.b16 %v353
    %v614 = vunpack.c.l.b16 %v354
    %v615 = vunpack.c.l.b16 %v355
    %v616 = vunpack.c.l.b16 %v356
    %v617 = vunpack.c.l.b16 %v357
    %v618 = vunpack.c.l.b16 %v358
    %v619 = vunpack.c.l.b16 %v359
    %v620 = vunpack.c.l.b16 %v360
    %v621 = vunpack.c.l.b16 %v361
    %v622 = vunpack.c.l.b16 %v362
    %v623 = vunpack.c.l.b16 %v363
    %v624 = vunpack.c.l.b16 %v364
    %v625 = vunpack.c.l.b16 %v365
    %v626 = vunpack.c.l.b16 %v366
    %v627 = vunpack.c.l.b16 %v367
    %v628 = vunpack.c.l.b16 %v368
    %v629 = vunpack.c.l.b16 %v369
    %v630 = vunpack.c.l.b16 %v370
    %v631 = vunpack.c.l.b16 %v371
    %v632 = vunpack.c.l.b16 %v372
    %v633 = vunpack.c.l.b16 %v373
    %v634 = vunpack.c.l.b16 %v374
    %v635 = vunpack.c.l.b16 %v375
    %v636 = vunpack.c.l.b16 %v376
    %v637 = vunpack.c.l.b16 %v377
    %v638 = vunpack.c.l.b16 %v378
    %v639 = vunpack.c.l.b16 %v379
    %v640 = vunpack.c.l.b16 %v380
    %v641 = vunpack.c.l.b16 %v381
    %v642 = vunpack.c.l.b16 %v382
    %v643 = vunpack.c.l.b16 %v383
    %v644 = vunpack.c.l.b16 %v384
    %v645 = vunpack.c.l.b16 %v385
    %v646 = vunpack.c.l.b16 %v386
    %v647 = vunpack.c.l.b16 %v387
    %v648 = vunpack.c.l.b16 %v388
    %v649 = vunpack.c.l.b16 %v389
    %v650 = vunpack.c.l.b16 %v390
    %v651 = vunpack.c.l.b16 %v391
    %v652 = vunpack.c.l.b16 %v392
    %v653 = vunpack.c.l.b16 %v393
    %v654 = vunpack.c.l.b16 %v394
    %v655 = vunpack.c.l.b16 %v395
    %v656 = vunpack.c.l.b16 %v396
    %v657 = vunpack.c.l.b16 %v397
    %v658 = vunpack.c.l.b16 %v398
    %v659 = vunpack.c.l.b16 %v399
    %v660 = vunpack.c.l.b16 %v400
    %v661 = vunpack.c.l.b16 %v401
    %v662 = vunpack.c.l.b16 %v402
    %v663 = vunpack.c.l.b16 %v403
    %v664 = vunpack.c.l.b16 %v404
    %v665 = vunpack.c.l.b16 %v405
    %v666 = vunpack.c.l.b16 %v406
    %v667 = vunpack.c.l.b16 %v407
    %v668 = vunpack.c.l.b16 %v408
    %v669 = vunpack.c.l.b16 %v409
    %v670 = vunpack.c.l.b16 %v410
    %v671 = vunpack.c.l.b16 %v411
    %v672 = vunpack.c.l.b16 %v412
    %v673 = vunpack.c.l.b16 %v413
    %v674 = vunpack.c.l.b16 %v414
    %v675 = vunpack.c.l.b16 %v415
    %v676 = vunpack.c.l.b16 %v416
    %v677 = vunpack.c.l.b16 %v417
    %v678 = vunpack.c.l.b16 %v418
    %v679 = vunpack.c.l.b16 %v419
    %v680 = vunpack.c.l.b16 %v420
    %v681 = vunpack.c.l.b16 %v421
    %v682 = vunpack.c.l.b16 %v422
    %v683 = vunpack.c.l.b16 %v423
    %v684 = vunpack.c.l.b16 %v424
    %v685 = vunpack.c.l.b16 %v425
    %v686 = vpack.c.b16 %v559, %v558
    %v687 = vpack.c.b16 %v561, %v560
    %v688 = vpack.c.b16 %v563, %v562
    %v689 = vpack.c.b16 %v565, %v564
    %v690 = vpack.c.b16 %v567, %v566
    %v691 = vpack.c.b16 %v569, %v568
    %v692 = vpack.c.b16 %v571, %v570
    %v693 = vpack.c.b16 %v573, %v572
    %v694 = vpack.c.b16 %v575, %v574
    %v695 = vpack.c.b16 %v577, %v576
    %v696 = vpack.c.b16 %v579, %v578
    %v697 = vpack.c.b16 %v581, %v580
    %v698 = vpack.c.b16 %v583, %v582
    %v699 = vpack.c.b16 %v585, %v584
    %v700 = vpack.c.b16 %v587, %v586
    %v701 = vpack.c.b16 %v589, %v588
    %v702 = vpack.c.b16 %v591, %v590
    %v703 = vpack.c.b16 %v593, %v592
    %v704 = vpack.c.b16 %v595, %v594
    %v705 = vpack.c.b16 %v597, %v596
    %v706 = vpack.c.b16 %v599, %v598
    %v707 = vpack.c.b16 %v601, %v600
    %v708 = vpack.c.b16 %v603, %v602
    %v709 = vpack.c.b16 %v605, %v604
    %v710 = vpack.c.b16 %v607, %v606
    %v711 = vpack.c.b16 %v609, %v608
    %v712 = vpack.c.b16 %v611, %v610
    %v713 = vpack.c.b16 %v613, %v612
    %v714 = vpack.c.b16 %v615, %v614
    %v715 = vpack.c.b16 %v617, %v616
    %v716 = vpack.c.b16 %v619, %v618
    %v717 = vpack.c.b16 %v621, %v620
    %v718 = vpack.c.b16 %v623, %v622
    %v719 = vpack.c.b16 %v625, %v624
    %v720 = vpack.c.b16 %v627, %v626
    %v721 = vpack.c.b16 %v629, %v628
    %v722 = vpack.c.b16 %v631, %v630
    %v723 = vpack.c.b16 %v633, %v632
    %v724 = vpack.c.b16 %v635, %v634
    %v725 = vpack.c.b16 %v637, %v636
    %v726 = vpack.c.b16 %v639, %v638
    %v727 = vpack.c.b16 %v641, %v640
    %v728 = vpack.c.b16 %v643, %v642
    %v729 = vpack.c.b16 %v645, %v644
    %v730 = vpack.c.b16 %v647, %v646
    %v731 = vpack.c.b16 %v649, %v648
    %v732 = vpack.c.b16 %v651, %v650
    %v733 = vpack.c.b16 %v653, %v652
    %v734 = vpack.c.b16 %v655, %v654
    %v735 = vpack.c.b16 %v657, %v656
    %v736 = vpack.c.b16 %v659, %v658
    %v737 = vpack.c.b16 %v661, %v660
    %v738 = vpack.c.b16 %v663, %v662
    %v739 = vpack.c.b16 %v665, %v664
    %v740 = vpack.c.b16 %v667, %v666
    %v741 = vpack.c.b16 %v669, %v668
    %v742 = vpack.c.b16 %v671, %v670
    %v743 = vpack.c.b16 %v673, %v672
    %v744 = vpack.c.b16 %v675, %v674
    %v745 = vpack.c.b16 %v677, %v676
    %v746 = vpack.c.b16 %v679, %v678
    %v747 = vpack.c.b16 %v681, %v680
    %v748 = vpack.c.b16 %v683, %v682
    %v749 = vpack.c.b16 %v685, %v684
    %814 = vmatpush.bf16.msra.mxu0 %v693
    %815 = vmatpush.bf16.msra.mxu0 %v692
    %816 = vmatpush.bf16.msra.mxu0 %v691
    %817 = vmatpush.bf16.msra.mxu0 %v690
    %818 = vmatpush.bf16.msra.mxu0 %v689
    %819 = vmatpush.bf16.msra.mxu0 %v688
    %820 = vmatpush.bf16.msra.mxu0 %v687
    %821 = vmatpush.bf16.msra.mxu0 %v686
    %822 = vmatmul.bf16.gmra.mxu0 %v290
    %v823 = vpop.f32.mrf.mxu0
    %v824 = vadd.f32 %v428, %v823
    %v825 = vpop.f32.mrf.mxu0
    %826 = vdwg.mxu0
    %827 = vmatpush.bf16.msra.mxu0 %v701
    %828 = vmatpush.bf16.msra.mxu0 %v700
    %829 = vmatpush.bf16.msra.mxu0 %v699
    %830 = vmatpush.bf16.msra.mxu0 %v698
    %831 = vmatpush.bf16.msra.mxu0 %v697
    %832 = vmatpush.bf16.msra.mxu0 %v696
    %833 = vmatpush.bf16.msra.mxu0 %v695
    %834 = vmatpush.bf16.msra.mxu0 %v694
    %835 = vmatmul.bf16.gmra.mxu0 %v291
    %v836 = vpop.f32.mrf.mxu0
    %v837 = vadd.f32 %v824, %v836
    %v838 = vpop.f32.mrf.mxu0
    %839 = vdwg.mxu0
    %840 = vmatpush.bf16.msra.mxu0 %v709
    %841 = vmatpush.bf16.msra.mxu0 %v708
    %842 = vmatpush.bf16.msra.mxu0 %v707
    %843 = vmatpush.bf16.msra.mxu0 %v706
    %844 = vmatpush.bf16.msra.mxu0 %v705
    %845 = vmatpush.bf16.msra.mxu0 %v704
    %846 = vmatpush.bf16.msra.mxu0 %v703
    %847 = vmatpush.bf16.msra.mxu0 %v702
    %848 = vmatmul.bf16.gmra.mxu0 %v292
    %v849 = vpop.f32.mrf.mxu0
    %v850 = vadd.f32 %v837, %v849
    %v851 = vpop.f32.mrf.mxu0
    %852 = vdwg.mxu0
    %853 = vmatpush.bf16.msra.mxu0 %v717
    %854 = vmatpush.bf16.msra.mxu0 %v716
    %855 = vmatpush.bf16.msra.mxu0 %v715
    %856 = vmatpush.bf16.msra.mxu0 %v714
    %857 = vmatpush.bf16.msra.mxu0 %v713
    %858 = vmatpush.bf16.msra.mxu0 %v712
    %859 = vmatpush.bf16.msra.mxu0 %v711
    %860 = vmatpush.bf16.msra.mxu0 %v710
    %861 = vmatmul.bf16.gmra.mxu0 %v293
    %v862 = vpop.f32.mrf.mxu0
    %v863 = vadd.f32 %v850, %v862
    %v864 = vpop.f32.mrf.mxu0
    %865 = vdwg.mxu0
    %866 = vmatpush.bf16.msra.mxu0 %v725
    %867 = vmatpush.bf16.msra.mxu0 %v724
    %868 = vmatpush.bf16.msra.mxu0 %v723
    %869 = vmatpush.bf16.msra.mxu0 %v722
    %870 = vmatpush.bf16.msra.mxu0 %v721
    %871 = vmatpush.bf16.msra.mxu0 %v720
    %872 = vmatpush.bf16.msra.mxu0 %v719
    %873 = vmatpush.bf16.msra.mxu0 %v718
    %874 = vmatmul.bf16.gmra.mxu0 %v294
    %v875 = vpop.f32.mrf.mxu0
    %v876 = vadd.f32 %v863, %v875
    %v877 = vpop.f32.mrf.mxu0
    %878 = vdwg.mxu0
    %879 = vmatpush.bf16.msra.mxu0 %v733
    %880 = vmatpush.bf16.msra.mxu0 %v732
    %881 = vmatpush.bf16.msra.mxu0 %v731
    %882 = vmatpush.bf16.msra.mxu0 %v730
    %883 = vmatpush.bf16.msra.mxu0 %v729
    %884 = vmatpush.bf16.msra.mxu0 %v728
    %885 = vmatpush.bf16.msra.mxu0 %v727
    %886 = vmatpush.bf16.msra.mxu0 %v726
    %887 = vmatmul.bf16.gmra.mxu0 %v295
    %v888 = vpop.f32.mrf.mxu0
    %v889 = vadd.f32 %v876, %v888
    %v890 = vpop.f32.mrf.mxu0
    %891 = vdwg.mxu0
    %892 = vmatpush.bf16.msra.mxu0 %v741
    %893 = vmatpush.bf16.msra.mxu0 %v740
    %894 = vmatpush.bf16.msra.mxu0 %v739
    %895 = vmatpush.bf16.msra.mxu0 %v738
    %896 = vmatpush.bf16.msra.mxu0 %v737
    %897 = vmatpush.bf16.msra.mxu0 %v736
    %898 = vmatpush.bf16.msra.mxu0 %v735
    %899 = vmatpush.bf16.msra.mxu0 %v734
    %900 = vmatmul.bf16.gmra.mxu0 %v296
    %v901 = vpop.f32.mrf.mxu0
    %v902 = vadd.f32 %v889, %v901
    %v903 = vpop.f32.mrf.mxu0
    %904 = vdwg.mxu0
    %905 = vmatpush.bf16.msra.mxu0 %v749
    %906 = vmatpush.bf16.msra.mxu0 %v748
    %907 = vmatpush.bf16.msra.mxu0 %v747
    %908 = vmatpush.bf16.msra.mxu0 %v746
    %909 = vmatpush.bf16.msra.mxu0 %v745
    %910 = vmatpush.bf16.msra.mxu0 %v744
    %911 = vmatpush.bf16.msra.mxu0 %v743
    %912 = vmatpush.bf16.msra.mxu0 %v742
    %913 = vmatmul.bf16.gmra.mxu0 %v297
    %v914 = vpop.f32.mrf.mxu0
    %v915 = vadd.f32 %v902, %v914
    %v916 = vpop.f32.mrf.mxu0
    %917 = vdwg.mxu0
    %v918 = vlaneseq
    %v919 = vshrl.u32 %v918, 7
    %vm920 = vcmp.lt.s32.totalorder %v919, 2
    %v921 = vsub.f32 %v69, %v915
    %v922 = vmul.f32 %v921, %v921
    %v923 = vsel %vm55, %v922, 0.0
    %924 = vadd.xlane.f32.xlu0 %v923
    %v925 = vpop.xlane.xlu0 %924
    %v926 = vmul.f32 %v925, 0.03125
    %927 = vrot.lane.b32.xlu0 %v196, 127
    %v928 = vpop.permute.xlu0 %927
    %929 = vrot.lane.b32.xlu0 %v209, 127
    %v930 = vpop.permute.xlu0 %929
    %931 = vrot.lane.b32.xlu0 %v222, 127
    %v932 = vpop.permute.xlu0 %931
    %933 = vrot.lane.b32.xlu0 %v235, 127
    %v934 = vpop.permute.xlu0 %933
    %935 = vrot.lane.b32.xlu0 %v248, 127
    %v936 = vpop.permute.xlu0 %935
    %937 = vrot.lane.b32.xlu0 %v261, 127
    %v938 = vpop.permute.xlu0 %937
    %939 = vrot.lane.b32.xlu0 %v274, 127
    %v940 = vpop.permute.xlu0 %939
    %941 = vrot.lane.b32.xlu0 %v287, 127
    %v942 = vpop.permute.xlu0 %941
    %v943 = vlaneseq
    %v944 = vand.u32 %v943, 127
    %vm945 = vcmp.lt.s32.totalorder %v944, 127
    %v946 = vsel %vm945, %v940, %v942
    %v947 = vsel %vm945, %v938, %v940
    %v948 = vsel %vm945, %v936, %v938
    %v949 = vsel %vm945, %v934, %v936
    %v950 = vsel %vm945, %v932, %v934
    %v951 = vsel %vm945, %v930, %v932
    %v952 = vsel %vm945, %v928, %v930
    %v953 = vsel %vm945, %v942, %v928
    %954 = vrot.lane.b32.xlu0 %v196, 112
    %v955 = vpop.permute.xlu0 %954
    %956 = vrot.lane.b32.xlu0 %v209, 112
    %v957 = vpop.permute.xlu0 %956
    %958 = vrot.lane.b32.xlu0 %v222, 112
    %v959 = vpop.permute.xlu0 %958
    %960 = vrot.lane.b32.xlu0 %v235, 112
    %v961 = vpop.permute.xlu0 %960
    %962 = vrot.lane.b32.xlu0 %v248, 112
    %v963 = vpop.permute.xlu0 %962
    %964 = vrot.lane.b32.xlu0 %v261, 112
    %v965 = vpop.permute.xlu0 %964
    %966 = vrot.lane.b32.xlu0 %v274, 112
    %v967 = vpop.permute.xlu0 %966
    %968 = vrot.lane.b32.xlu0 %v287, 112
    %v969 = vpop.permute.xlu0 %968
    %vm970 = vcmp.lt.s32.totalorder %v944, 112
    %v971 = vsel %vm970, %v967, %v969
    %v972 = vsel %vm970, %v965, %v967
    %v973 = vsel %vm970, %v963, %v965
    %v974 = vsel %vm970, %v961, %v963
    %v975 = vsel %vm970, %v959, %v961
    %v976 = vsel %vm970, %v957, %v959
    %v977 = vsel %vm970, %v955, %v957
    %v978 = vsel %vm970, %v969, %v955
    %v979 = vsub.f32 %v196, %v952
    %v980 = vsub.f32 %v209, %v951
    %v981 = vsub.f32 %v222, %v950
    %v982 = vsub.f32 %v235, %v949
    %v983 = vsub.f32 %v248, %v948
    %v984 = vsub.f32 %v261, %v947
    %v985 = vsub.f32 %v274, %v946
    %v986 = vsub.f32 %v287, %v953
    %v987 = vand.u32 2147483647, %v979
    %v988 = vand.u32 2147483647, %v980
    %v989 = vand.u32 2147483647, %v981
    %v990 = vand.u32 2147483647, %v982
    %v991 = vand.u32 2147483647, %v983
    %v992 = vand.u32 2147483647, %v984
    %v993 = vand.u32 2147483647, %v985
    %v994 = vand.u32 2147483647, %v986
    %v995 = vld [vmem:[%s7] sm:$0xff]
    %v997 = vperm.slane %v995, 0
    %v998 = vperm.slane %v995, 1
    %v999 = vperm.slane %v995, 2
    %v1000 = vperm.slane %v995, 3
    %v1001 = vperm.slane %v995, 4
    %v1002 = vperm.slane %v995, 5
    %v1003 = vperm.slane %v995, 6
    %v1004 = vperm.slane %v995, 7
    %v1013 = vmul.f32 %v987, %v997
    %v1014 = vmul.f32 %v988, %v998
    %v1015 = vmul.f32 %v989, %v999
    %v1016 = vmul.f32 %v990, %v1000
    %v1017 = vmul.f32 %v991, %v1001
    %v1018 = vmul.f32 %v992, %v1002
    %v1019 = vmul.f32 %v993, %v1003
    %v1020 = vmul.f32 %v994, %v1004
    %v1021 = vsub.f32 %v196, %v977
    %v1022 = vsub.f32 %v209, %v976
    %v1023 = vsub.f32 %v222, %v975
    %v1024 = vsub.f32 %v235, %v974
    %v1025 = vsub.f32 %v248, %v973
    %v1026 = vsub.f32 %v261, %v972
    %v1027 = vsub.f32 %v274, %v971
    %v1028 = vsub.f32 %v287, %v978
    %v1029 = vand.u32 2147483647, %v1021
    %v1030 = vand.u32 2147483647, %v1022
    %v1031 = vand.u32 2147483647, %v1023
    %v1032 = vand.u32 2147483647, %v1024
    %v1033 = vand.u32 2147483647, %v1025
    %v1034 = vand.u32 2147483647, %v1026
    %v1035 = vand.u32 2147483647, %v1027
    %v1036 = vand.u32 2147483647, %v1028
    %v1037 = vld [vmem:[%s8] sm:$0xff]
    %v1039 = vperm.slane %v1037, 0
    %v1040 = vperm.slane %v1037, 1
    %v1041 = vperm.slane %v1037, 2
    %v1042 = vperm.slane %v1037, 3
    %v1043 = vperm.slane %v1037, 4
    %v1044 = vperm.slane %v1037, 5
    %v1045 = vperm.slane %v1037, 6
    %v1046 = vperm.slane %v1037, 7
    %v1055 = vmul.f32 %v1029, %v1039
    %v1056 = vmul.f32 %v1030, %v1040
    %v1057 = vmul.f32 %v1031, %v1041
    %v1058 = vmul.f32 %v1032, %v1042
    %v1059 = vmul.f32 %v1033, %v1043
    %v1060 = vmul.f32 %v1034, %v1044
    %v1061 = vmul.f32 %v1035, %v1045
    %v1062 = vmul.f32 %v1036, %v1046
    %v1063 = vadd.f32 %v1013, %v1055
    %v1064 = vadd.f32 %v1014, %v1056
    %v1065 = vadd.f32 %v1015, %v1057
    %v1066 = vadd.f32 %v1016, %v1058
    %v1067 = vadd.f32 %v1017, %v1059
    %v1068 = vadd.f32 %v1018, %v1060
    %v1069 = vadd.f32 %v1019, %v1061
    %v1070 = vadd.f32 %v1020, %v1062
    %v1071 = vadd.f32 %v1063, %v1064
    %v1072 = vadd.f32 %v1071, %v1065
    %v1073 = vadd.f32 %v1072, %v1066
    %v1074 = vadd.f32 %v1073, %v1067
    %v1075 = vadd.f32 %v1074, %v1068
    %v1076 = vadd.f32 %v1075, %v1069
    %v1077 = vadd.f32 %v1076, %v1070
    %1078 = vadd.xlane.f32.xlu0 %v1077
    %v1079 = vpop.xlane.xlu0 %1078
    %v1080 = vadd.f32 %v926, %v1079
    %v1081 = vsel %vm920, %v1080, 0.0
    %vm1082 = vcmask 7168
    %v1083 = vsel %vm1082, %v1081, 0.0
    %1084 = vadd.xlane.f32.xlu0 %v1083
    %v1085 = vpop.xlane.xlu0 %1084
    %v1086 = vrot.slane %v1085, 4
    %v1087 = vadd.f32 %v1085, %v1086
    %v1088 = vrot.slane %v1087, 2
    %v1089 = vadd.f32 %v1087, %v1088
    %v1090 = vrot.slane %v1089, 1
    %v1091 = vadd.f32 %v1089, %v1090
    %s1092 = vtos %v1091
    %s1093 = smul.f32 %s1092, 0.5
    %s1094 = scalar_lea.smem [#allocation2], 0
    %1095 = sst [smem:[%s1094]] %s1093
    // Predicated region
    $region38: #{tpu_custom_call.1} parent=1 // pred_check
      _
    $region39: #{tpu_custom_call.1} parent=1 // pred_check_branch
      %1097 = sbr.rel (0) target = $region41
    $region40: #{tpu_custom_call.1} parent=1 // pred_region
      %1099 = vsyncadd [#allocation3], 0
      %s1101 = sshll.u32 %s9, 4
      %s1102 = int_to_ptr.hbm [resolvable:$true] %s1101
      %1104 = dma.smem_to_hbm [#allocation2], 16, %s1102, [#allocation3]
    $region41: #{tpu_custom_call.1} parent=1 // pred_fallthru
      _
    // Predicated region
    $region42: #{tpu_custom_call.1} parent=1 // pred_check
      _
    $region43: #{tpu_custom_call.1} parent=1 // pred_check_branch
      %1106 = sbr.rel (0) target = $region45
    $region44: #{tpu_custom_call.1} parent=1 // pred_region
      %1108 = dma.done [#allocation3], 16
    $region45: #{tpu_custom_call.1} parent=1 // pred_fallthru
      _
    %1109 = sfence
    %1110 = vsyncpa [#allocation3], 1

</llo_original>
